<compile_context>
chip_gen: v5e
topology: v5e:2x2
jax: 0.10.0
libtpu: 0.0.40
codegen_flags: <defaults>
</compile_context>

<pallas_src>
import math

import jax
import jax.numpy as jnp
from jax import lax
from jax.experimental import pallas as pl
from jax.experimental.pallas import tpu as pltpu


# --------------------------------------------------------------------------- #
# Kernels
# --------------------------------------------------------------------------- #
def _ffn_kernel_inplace(x_ref, w1t_ref, b1_ref, w2_ref, b2_ref, o_ref):
    """f32-output path: accumulate partial results directly into o_ref.

    grid = (row tiles i, hidden tiles k). o += relu(x @ W1_k + b1_k) @ W2_k.
    """
    k = pl.program_id(1)

    # First matmul: x (tm, E) bf16  x  W1ᵀ tile (th, E) bf16, contract dim 1.
    h = lax.dot_general(x_ref[...], w1t_ref[...],
                        (((1,), (1,)), ((), ())),
                        preferred_element_type=jnp.float32)        # (tm, th)
    h = jnp.maximum(h + b1_ref[...], 0.0)                          # bias+ReLU f32
    part = jnp.dot(h.astype(jnp.bfloat16), w2_ref[...],
                   preferred_element_type=jnp.float32)             # (tm, E)

    @pl.when(k == 0)
    def _init():
        o_ref[...] = b2_ref[...] + part        # bias added exactly once

    @pl.when(k > 0)
    def _accum():
        o_ref[...] += part


def _ffn_kernel_scratch(x_ref, w1t_ref, b1_ref, w2_ref, b2_ref, o_ref, acc_ref):
    """Narrow-output path: accumulate in f32 scratch, cast once in epilogue."""
    k = pl.program_id(1)

    h = lax.dot_general(x_ref[...], w1t_ref[...],
                        (((1,), (1,)), ((), ())),
                        preferred_element_type=jnp.float32)
    h = jnp.maximum(h + b1_ref[...], 0.0)
    part = jnp.dot(h.astype(jnp.bfloat16), w2_ref[...],
                   preferred_element_type=jnp.float32)

    @pl.when(k == 0)
    def _init():
        acc_ref[...] = b2_ref[...] + part

    @pl.when(k > 0)
    def _accum():
        acc_ref[...] += part

    @pl.when(k == pl.num_programs(1) - 1)
    def _fini():
        o_ref[...] = acc_ref[...].astype(o_ref.dtype)


# --------------------------------------------------------------------------- #
# Hardware / tiling helpers
# --------------------------------------------------------------------------- #
def _round_up(x, m):
    return (x + m - 1) // m * m


def _cdiv(a, b):
    return -(-a // b)


def _chip_config():
    """Returns (vmem_limit_bytes, tm_cap, th_min, num_tensorcores)."""
    gen = 0
    try:
        kind = jax.devices()[0].device_kind.lower()
        if "v7" in kind or "7x" in kind:
            gen = 7
        elif "v6" in kind:
            gen = 6
        elif "v5" in kind:
            gen = 5
    except Exception:
        pass

    try:
        vmem_cap = int(pltpu.get_tpu_info().vmem_capacity_bytes)
    except Exception:
        vmem_cap = (64 if gen == 7 else 128) * 1024 * 1024

    mib = 1024 * 1024
    if gen == 7:
        # 64 MiB physical per TC: leave headroom for compiler scratch.
        vmem_limit = max(min(vmem_cap, 64 * mib) - 8 * mib, 32 * mib)
        tm_cap, th_min, num_tc = 512, 256, 2
    elif gen == 6:
        vmem_limit = max(min(vmem_cap - 16 * mib, 100 * mib), 48 * mib)
        tm_cap, th_min, num_tc = 1024, 256, 1
    elif gen == 5:
        vmem_limit = max(min(vmem_cap - 16 * mib, 100 * mib), 48 * mib)
        tm_cap, th_min, num_tc = 512, 128, 1
    else:  # unknown / interpret: stay conservative
        vmem_limit = max(min(vmem_cap // 2, 48 * mib), 32 * mib)
        tm_cap, th_min, num_tc = 512, 128, 1
    return vmem_limit, tm_cap, th_min, num_tc


def _vmem_bytes(tm, th, e_pad, out_bytes, use_scratch):
    """Per-step VMEM footprint incl. double buffering and the h intermediate."""
    xb = 2 * tm * e_pad * 2           # x tile, bf16, double-buffered
    w1b = 2 * th * e_pad * 2          # W1ᵀ k-tile, bf16
    w2b = 2 * th * e_pad * 2          # W2 k-tile, bf16
    bb = 2 * (th + e_pad) * 4         # biases (f32)
    ob = 2 * tm * e_pad * out_bytes   # output tile
    hb = tm * th * (4 + 2)            # f32 h + its bf16 copy
    acc = tm * e_pad * 4 if use_scratch else 0
    return xb + w1b + w2b + bb + ob + hb + acc


def _pick_tiles(n_rows, e_pad, h_pad, budget_bytes, out_bytes, use_scratch,
                tm_cap, th_min, num_tc):
    """Choose (row_tile, hidden_tile): biggest tiles that fit the VMEM budget."""
    th_cands = [c for c in (h_pad, 2048, 1024, 512, 256, 128)
                if c <= h_pad and h_pad % c == 0]
    if h_pad >= th_min:
        # Keep the MXU full on 256x256 generations (v6e/v7x).
        filtered = [c for c in th_cands if c >= th_min]
        if filtered:
            th_cands = filtered
    th_cands = sorted(set(th_cands), reverse=True)

    n8 = _round_up(max(n_rows, 1), 8)
    if n8 <= tm_cap:
        # Small row count: one row tile on single-TC chips (no weight
        # re-streaming); split 2-way only on v7x so both TCs get work.
        if num_tc >= 2 and n8 > 8:
            cands = {_round_up(_cdiv(n8, 2), 8)}
        else:
            cands = {n8}
        cands |= {max(8, _round_up(n8 // 4, 8)), 8}
        tm_cands = sorted(cands, reverse=True)
    else:
        tm_cands = [t for t in (1024, 768, 512, 384, 256, 128, 64, 32, 16, 8)
                    if t <= tm_cap]

    for tm in tm_cands:                 # big row tiles cut weight re-streaming
        for th in th_cands:             # then big hidden tiles
            if _vmem_bytes(tm, th, e_pad, out_bytes, use_scratch) <= budget_bytes:
                return tm, th
    return 8, min(th_cands)             # minimal fallback (always fits)


# --------------------------------------------------------------------------- #
# Parameter preparation (hoisted out of the per-call path)
# --------------------------------------------------------------------------- #
def prepare_feed_forward_params(w1, b1, w2, b2, weight_dtype=jnp.bfloat16):
    """Pad / transpose / cast weights once; reuse across forward calls.

    w1: (E, H), b1: (H,), w2: (H, E), b2: (E,).
    """
    E, H = w1.shape
    E_pad = _round_up(E, 128)
    H_pad = _round_up(H, 128)
    # Zero-padding is exact: padded E columns of x contribute nothing, padded
    # H columns give relu(0 + 0) = 0, padded output columns are sliced off.
    w1t_p = jnp.pad(w1.T, ((0, H_pad - H), (0, E_pad - E))).astype(weight_dtype)
    w2_p = jnp.pad(w2, ((0, H_pad - H), (0, E_pad - E))).astype(weight_dtype)
    b1_p = jnp.pad(b1, (0, H_pad - H)).reshape(1, H_pad).astype(jnp.float32)
    b2_p = jnp.pad(b2, (0, E_pad - E)).reshape(1, E_pad).astype(jnp.float32)
    return {"w1t": w1t_p, "w2": w2_p, "b1": b1_p, "b2": b2_p,
            "E": E, "H": H, "E_pad": E_pad, "H_pad": H_pad}


# --------------------------------------------------------------------------- #
# Forward
# --------------------------------------------------------------------------- #
def feed_forward_apply(x, params):
    """x: (..., E) with prepared params (see prepare_feed_forward_params)."""
    orig_shape = x.shape
    E, E_pad, H_pad = params["E"], params["E_pad"], params["H_pad"]
    assert orig_shape[-1] == E, "last dim of x must equal embedding_dim"
    out_dtype = x.dtype

    x2d = x.reshape(-1, E)
    N = x2d.shape[0]
    out_bytes = jnp.dtype(out_dtype).itemsize
    use_scratch = out_dtype != jnp.float32

    vmem_limit, tm_cap, th_min, num_tc = _chip_config()
    budget = int(0.85 * vmem_limit)
    tm, th = _pick_tiles(N, E_pad, H_pad, budget, out_bytes, use_scratch,
                         tm_cap, th_min, num_tc)

    # Minimize row-padding waste: keep the tile count, shrink tm to fit N.
    n_tiles = max(_cdiv(max(N, 1), tm), 2 if (num_tc >= 2 and N > 8) else 1)
    tm = _round_up(_cdiv(max(N, 1), n_tiles), 8)
    N_pad = n_tiles * tm

    # x is cast to bf16 here (MXU operand dtype); activations/bias stay f32
    # inside the kernel, accumulation is f32.
    x_p = jnp.pad(x2d.astype(jnp.bfloat16), ((0, N_pad - N), (0, E_pad - E)))

    w1t_p, w2_p = params["w1t"], params["w2"]
    b1_p, b2_p = params["b1"], params["b2"]

    grid = (N_pad // tm, H_pad // th)

    flops = 4 * N_pad * E_pad * H_pad  # two matmuls, 2 flops per MAC
    bytes_accessed = (
        x_p.size * 2
        + grid[0] * (w1t_p.size + w2_p.size) * 2   # weights re-streamed per row tile
        + (b1_p.size + b2_p.size) * 4
        + N_pad * E_pad * out_bytes)

    in_specs = [
        pl.BlockSpec((tm, E_pad), lambda i, k: (i, 0)),     # x row tile
        pl.BlockSpec((th, E_pad), lambda i, k: (k, 0)),     # W1ᵀ k-tile (contiguous)
        pl.BlockSpec((1, th), lambda i, k: (0, k)),         # b1 k-tile
        pl.BlockSpec((th, E_pad), lambda i, k: (k, 0)),     # W2 k-tile
        pl.BlockSpec((1, E_pad), lambda i, k: (0, 0)),      # b2
    ]
    out_spec = pl.BlockSpec((tm, E_pad), lambda i, k: (i, 0))

    if use_scratch:
        kernel = _ffn_kernel_scratch
        scratch_shapes = [pltpu.VMEM((tm, E_pad), jnp.float32)]
    else:
        kernel = _ffn_kernel_inplace          # accumulate directly in o_ref
        scratch_shapes = []

    out = pl.pallas_call(
        kernel,
        out_shape=jax.ShapeDtypeStruct((N_pad, E_pad), out_dtype),
        grid_spec=pltpu.PrefetchScalarGridSpec(
            num_scalar_prefetch=0,
            grid=grid,
            in_specs=in_specs,
            out_specs=out_spec,
            scratch_shapes=scratch_shapes,
        ),
        compiler_params=pltpu.CompilerParams(
            dimension_semantics=("parallel", "arbitrary"),
            vmem_limit_bytes=vmem_limit,
        ),
        cost_estimate=pl.CostEstimate(
            flops=flops, transcendentals=0, bytes_accessed=bytes_accessed),
    )(x_p, w1t_p, b1_p, w2_p, b2_p)

    return out[:N, :E].reshape(orig_shape)


def feed_forward_pallas(x, w1, b1, w2, b2):
    """Convenience one-shot wrapper (prepares weights on the fly)."""
    return feed_forward_apply(x, prepare_feed_forward_params(w1, b1, w2, b2))


# --------------------------------------------------------------------------- #
# Params / reference
# --------------------------------------------------------------------------- #
def init_feed_forward_params(key, embedding_dim, ff_hidden_dim, dtype=jnp.float32):
    """Init matching nn.Linear defaults; weights stored as (in, out)."""
    k1, k2, k3, k4 = jax.random.split(key, 4)
    bound1 = 1.0 / math.sqrt(embedding_dim)
    bound2 = 1.0 / math.sqrt(ff_hidden_dim)
    w1 = jax.random.uniform(k1, (embedding_dim, ff_hidden_dim), dtype,
                            minval=-bound1, maxval=bound1)
    b1 = jax.random.uniform(k2, (ff_hidden_dim,), dtype,
                            minval=-bound1, maxval=bound1)
    w2 = jax.random.uniform(k3, (ff_hidden_dim, embedding_dim), dtype,
                            minval=-bound2, maxval=bound2)
    b2 = jax.random.uniform(k4, (embedding_dim,), dtype,
                            minval=-bound2, maxval=bound2)
    return w1, b1, w2, b2


def feed_forward_ref(x, w1, b1, w2, b2):
    h = jnp.maximum(x @ w1 + b1, 0.0)
    return h @ w2 + b2


# --------------------------------------------------------------------------- #
# Test
# --------------------------------------------------------------------------- #
if __name__ == "__main__":
    key = jax.random.PRNGKey(0)
    kx, kp, kx2, kp2 = jax.random.split(key, 4)

    # Primary small test (matches the module's expected usage).
    batch, seq = 2, 8
    embedding_dim, ff_hidden_dim = 32, 64
    x = jax.random.normal(kx, (batch, seq, embedding_dim), dtype=jnp.float32)
    w1, b1, w2, b2 = init_feed_forward_params(kp, embedding_dim, ff_hidden_dim)

    # Weight prep hoisted out of the forward call (cached across calls).
    params = prepare_feed_forward_params(w1, b1, w2, b2)
    y = jax.block_until_ready(feed_forward_apply(x, params))
    y_ref = feed_forward_ref(x, w1, b1, w2, b2)
    assert y.shape == x.shape
    err = float(jnp.max(jnp.abs(y - y_ref)))
    # bf16 MXU operands with f32 accumulation -> ~1e-3 abs error at these scales.
    assert err < 2e-2, f"mismatch vs reference: max abs err {err}"

    # One-shot wrapper + ragged shapes (rows / E / H not multiples of tiles).
    x2 = jax.random.normal(kx2, (3, 5, 48), dtype=jnp.float32)
    p2 = init_feed_forward_params(kp2, 48, 80)
    y2 = jax.block_until_ready(feed_forward_pallas(x2, *p2))
    y2_ref = feed_forward_ref(x2, *p2)
    err2 = float(jnp.max(jnp.abs(y2 - y2_ref)))
    assert y2.shape == x2.shape
    assert err2 < 2e-2, f"ragged-shape mismatch vs reference: max abs err {err2}"

    # bf16-input path exercises the scratch-accumulator kernel variant.
    x3 = x.astype(jnp.bfloat16)
    y3 = jax.block_until_ready(feed_forward_apply(x3, params))
    err3 = float(jnp.max(jnp.abs(y3.astype(jnp.float32) - y_ref)))
    assert y3.dtype == jnp.bfloat16 and y3.shape == x.shape
    assert err3 < 6e-2, f"bf16-output mismatch vs reference: max abs err {err3}"

    print("KERNEL_OK")
</pallas_src>

<mosaic_0001>
module attributes {stable_mosaic.version = 11 : i64} {
  func.func @_ffn_kernel_inplace(%arg0: i32, %arg1: i32, %arg2: memref<16x128xbf16, #tpu.memory_space<vmem>>, %arg3: memref<128x128xbf16, #tpu.memory_space<vmem>>, %arg4: memref<1x128xf32, #tpu.memory_space<vmem>>, %arg5: memref<128x128xbf16, #tpu.memory_space<vmem>>, %arg6: memref<1x128xf32, #tpu.memory_space<vmem>>, %arg7: memref<16x128xf32, #tpu.memory_space<vmem>>) attributes {dimension_semantics = [#tpu.dimension_semantics<parallel>, #tpu.dimension_semantics<arbitrary>], iteration_bounds = array<i64: 1, 1>, scalar_prefetch = 0 : i64, scratch_operands = 0 : i64, tpu.core_type = #tpu.core_type<tc>, window_params = [{transform_indices = @transform_0, window_bounds = array<i64: 16, 128>}, {transform_indices = @transform_1, window_bounds = array<i64: 128, 128>}, {transform_indices = @transform_2, window_bounds = array<i64: 1, 128>}, {transform_indices = @transform_3, window_bounds = array<i64: 128, 128>}, {pipeline_mode = #tpu.pipeline_mode<synchronous>, transform_indices = @transform_4, window_bounds = array<i64: 1, 128>}, {transform_indices = @transform_5, window_bounds = array<i64: 16, 128>}]} {
    %c0 = arith.constant 0 : index
    %c0_0 = arith.constant 0 : index
    %0 = vector.load %arg2[%c0, %c0_0] : memref<16x128xbf16, #tpu.memory_space<vmem>>, vector<16x128xbf16>
    %c0_1 = arith.constant 0 : index
    %c0_2 = arith.constant 0 : index
    %1 = vector.load %arg3[%c0_1, %c0_2] : memref<128x128xbf16, #tpu.memory_space<vmem>>, vector<128x128xbf16>
    %cst = arith.constant dense<0.000000e+00> : vector<16x128xf32>
    %2 = tpu.matmul %0, %1, %cst {dimension_numbers = #tpu.dot_dimension_numbers<[1], [1], [0], [0], [0, 0, 1, 0], [], []>} : vector<16x128xbf16>, vector<128x128xbf16>, vector<16x128xf32> -> vector<16x128xf32>
    %c0_3 = arith.constant 0 : index
    %c0_4 = arith.constant 0 : index
    %3 = vector.load %arg4[%c0_3, %c0_4] : memref<1x128xf32, #tpu.memory_space<vmem>>, vector<1x128xf32>
    %4 = vector.broadcast %3 : vector<1x128xf32> to vector<16x128xf32>
    %5 = arith.addf %2, %4 : vector<16x128xf32>
    %cst_5 = arith.constant 0.000000e+00 : f32
    %6 = vector.broadcast %cst_5 : f32 to vector<16x128xf32>
    %7 = arith.maximumf %5, %6 : vector<16x128xf32>
    %8 = arith.truncf %7 : vector<16x128xf32> to vector<16x128xbf16>
    %c0_6 = arith.constant 0 : index
    %c0_7 = arith.constant 0 : index
    %9 = vector.load %arg5[%c0_6, %c0_7] : memref<128x128xbf16, #tpu.memory_space<vmem>>, vector<128x128xbf16>
    %cst_8 = arith.constant dense<0.000000e+00> : vector<16x128xf32>
    %10 = tpu.matmul %8, %9, %cst_8 {dimension_numbers = #tpu.dot_dimension_numbers<[1], [0], [0], [1], [0, 0, 1, 1], [], []>} : vector<16x128xbf16>, vector<128x128xbf16>, vector<16x128xf32> -> vector<16x128xf32>
    %c0_i32 = arith.constant 0 : i32
    %11 = arith.cmpi eq, %arg1, %c0_i32 : i32
    %12 = arith.extui %11 : i1 to i32
    %c0_i32_9 = arith.constant 0 : i32
    %13 = arith.cmpi ne, %12, %c0_i32_9 : i32
    scf.if %13 {
      %c0_12 = arith.constant 0 : index
      %c0_13 = arith.constant 0 : index
      %17 = vector.load %arg6[%c0_12, %c0_13] : memref<1x128xf32, #tpu.memory_space<vmem>>, vector<1x128xf32>
      %18 = vector.broadcast %17 : vector<1x128xf32> to vector<16x128xf32>
      %19 = arith.addf %18, %10 : vector<16x128xf32>
      %c0_14 = arith.constant 0 : index
      %c0_15 = arith.constant 0 : index
      %20 = vector.load %arg7[%c0_14, %c0_15] : memref<16x128xf32, #tpu.memory_space<vmem>>, vector<16x128xf32>
      tpu.vector_store %arg7[%c0_14, %c0_15], %19 {strides = array<i32>} : memref<16x128xf32, #tpu.memory_space<vmem>>, vector<16x128xf32>,
    } else {
    }
    %c0_i32_10 = arith.constant 0 : i32
    %14 = arith.cmpi sgt, %arg1, %c0_i32_10 : i32
    %15 = arith.extui %14 : i1 to i32
    %c0_i32_11 = arith.constant 0 : i32
    %16 = arith.cmpi ne, %15, %c0_i32_11 : i32
    scf.if %16 {
      %c0_12 = arith.constant 0 : index
      %c0_13 = arith.constant 0 : index
      %17 = vector.load %arg7[%c0_12, %c0_13] : memref<16x128xf32, #tpu.memory_space<vmem>>, vector<16x128xf32>
      %18 = arith.addf %17, %10 : vector<16x128xf32>
      %c0_14 = arith.constant 0 : index
      %c0_15 = arith.constant 0 : index
      %19 = vector.load %arg7[%c0_14, %c0_15] : memref<16x128xf32, #tpu.memory_space<vmem>>, vector<16x128xf32>
      tpu.vector_store %arg7[%c0_14, %c0_15], %18 {strides = array<i32>} : memref<16x128xf32, #tpu.memory_space<vmem>>, vector<16x128xf32>,
    } else {
    }
    return
  }
  func.func @transform_0(%arg0: i32, %arg1: i32) -> (i32, i32) {
    %c0_i32 = arith.constant 0 : i32
    %c0_i32_0 = arith.constant 0 : i32
    return %arg0, %c0_i32 : i32, i32
  }
  func.func @transform_1(%arg0: i32, %arg1: i32) -> (i32, i32) {
    %c0_i32 = arith.constant 0 : i32
    %c0_i32_0 = arith.constant 0 : i32
    return %arg1, %c0_i32 : i32, i32
  }
  func.func @transform_2(%arg0: i32, %arg1: i32) -> (i32, i32) {
    %c0_i32 = arith.constant 0 : i32
    %c0_i32_0 = arith.constant 0 : i32
    return %c0_i32, %arg1 : i32, i32
  }
  func.func @transform_3(%arg0: i32, %arg1: i32) -> (i32, i32) {
    %c0_i32 = arith.constant 0 : i32
    %c0_i32_0 = arith.constant 0 : i32
    return %arg1, %c0_i32 : i32, i32
  }
  func.func @transform_4(%arg0: i32, %arg1: i32) -> (i32, i32) {
    %c0_i32 = arith.constant 0 : i32
    %c0_i32_0 = arith.constant 0 : i32
    %c0_i32_1 = arith.constant 0 : i32
    return %c0_i32, %c0_i32_0 : i32, i32
  }
  func.func @transform_5(%arg0: i32, %arg1: i32) -> (i32, i32) {
    %c0_i32 = arith.constant 0 : i32
    %c0_i32_0 = arith.constant 0 : i32
    return %arg0, %c0_i32 : i32, i32
  }
}

</mosaic_0001>

<llo_original>
// kernel: tpu_custom_call.1
$region0: #{tpu_custom_call.1}
  #allocation0 [shape = 'u32[]', space=smem, size = 0x4, offset = 0x4, fixed_abs, tag = 'smem constant byte address 0x4 - core index']
  #allocation1 [shape = 'u32[72,128]{1,0:T(1,128)}', space=vmem, size = 0x9000, scoped, tag = 'internal scratch']
  %s0 = inlined_call_operand.hbm [shape: bf16[16,128], index: 0, kind: input, shape index: {}]
  %s1 = inlined_call_operand.hbm [shape: bf16[128,128], index: 1, kind: input, shape index: {}]
  %s2 = inlined_call_operand.vmem [shape: f32[1,128], index: 2, kind: input, shape index: {}]
  %s3 = inlined_call_operand.hbm [shape: bf16[128,128], index: 3, kind: input, shape index: {}]
  %s4 = inlined_call_operand.vmem [shape: f32[1,128], index: 4, kind: input, shape index: {}]
  %s5 = inlined_call_operand.hbm [shape: f32[16,128], index: 5, kind: output, shape index: {}]
  %s6 = sld [smem:[#allocation0]]
  $region50: #{tpu_custom_call.1} parent=0
    _
  %s8 = ssub.s32 1, %s6
  %s9 = scalar_select 0, %s8, %s6
  $region1: #{tpu_custom_call.1} parent=0
    #allocation2 [shape = 'u8[4096]{0}', space=vmem, size = 0x1000, scoped, tag = 'input window, operand 0, single buffered']
    #allocation3 [shape = 's32[1]{0}', space=sflag, size = 0x4, scoped, tag = 'scoped memory for tpu_custom_call.1']
    #allocation4 [shape = 's32[1]{0}', space=sflag, size = 0x4, scoped, tag = 'scoped memory for tpu_custom_call.1']
    #allocation5 [shape = 'u8[32768]{0}', space=vmem, size = 0x8000, scoped, tag = 'input window, operand 1, single buffered']
    #allocation6 [shape = 's32[1]{0}', space=sflag, size = 0x4, scoped, tag = 'scoped memory for tpu_custom_call.1']
    #allocation7 [shape = 'u8[32768]{0}', space=vmem, size = 0x8000, scoped, tag = 'input window, operand 3, single buffered']
    #allocation8 [shape = 'u8[8192]{0}', space=vmem, size = 0x2000, scoped, tag = 'output window, operand 0, single buffered']
    %10 = vsyncpa [#allocation3], 0
    %11 = vsyncpa [#allocation6], 0
    %12 = vsyncpa [#allocation4], 0
    // Predicated region
    $region2: #{tpu_custom_call.1} parent=1 // pred_check
      _
    $region3: #{tpu_custom_call.1} parent=1 // pred_check_branch
      %14 = sbr.rel (0) target = $region5
    $region4: #{tpu_custom_call.1} parent=1 // pred_region
      %16 = vsyncadd [#allocation3], 0
      %s17 = sshll.u32 %s0, 4
      %s18 = int_to_ptr.hbm [resolvable:$true] %s17
      %s19 = sshll.u32 [#allocation2], 4
      %s20 = int_to_ptr.vmem [resolvable:$true] %s19
      %25 = dma.hbm_to_vmem [thread:$0]  %s18, 128, %s20, [#allocation3], 64, 64, 4
    $region5: #{tpu_custom_call.1} parent=1 // pred_fallthru
      _
    // Predicated region
    $region6: #{tpu_custom_call.1} parent=1 // pred_check
      _
    $region7: #{tpu_custom_call.1} parent=1 // pred_check_branch
      %27 = sbr.rel (0) target = $region9
    $region8: #{tpu_custom_call.1} parent=1 // pred_region
      %29 = vsyncadd [#allocation6], 0
      %s30 = sshll.u32 %s1, 4
      %s31 = int_to_ptr.hbm [resolvable:$true] %s30
      %s32 = sshll.u32 [#allocation5], 4
      %s33 = int_to_ptr.vmem [resolvable:$true] %s32
      %38 = dma.hbm_to_vmem [thread:$0]  %s31, 1024, %s33, [#allocation6], 64, 64, 4
    $region9: #{tpu_custom_call.1} parent=1 // pred_fallthru
      _
    // Predicated region
    $region10: #{tpu_custom_call.1} parent=1 // pred_check
      _
    $region11: #{tpu_custom_call.1} parent=1 // pred_check_branch
      %40 = sbr.rel (0) target = $region13
    $region12: #{tpu_custom_call.1} parent=1 // pred_region
      _
    $region13: #{tpu_custom_call.1} parent=1 // pred_fallthru
      _
    // Predicated region
    $region14: #{tpu_custom_call.1} parent=1 // pred_check
      _
    $region15: #{tpu_custom_call.1} parent=1 // pred_check_branch
      %42 = sbr.rel (0) target = $region17
    $region16: #{tpu_custom_call.1} parent=1 // pred_region
      %44 = vsyncadd [#allocation6], 0
      %s45 = sshll.u32 %s3, 4
      %s46 = int_to_ptr.hbm [resolvable:$true] %s45
      %s47 = sshll.u32 [#allocation7], 4
      %s48 = int_to_ptr.vmem [resolvable:$true] %s47
      %53 = dma.hbm_to_vmem [thread:$0]  %s46, 1024, %s48, [#allocation6], 64, 64, 4
    $region17: #{tpu_custom_call.1} parent=1 // pred_fallthru
      _
    // Predicated region
    $region18: #{tpu_custom_call.1} parent=1 // pred_check
      _
    $region19: #{tpu_custom_call.1} parent=1 // pred_check_branch
      %55 = sbr.rel (0) target = $region21
    $region20: #{tpu_custom_call.1} parent=1 // pred_region
      _
    $region21: #{tpu_custom_call.1} parent=1 // pred_fallthru
      _
    // Predicated region
    $region22: #{tpu_custom_call.1} parent=1 // pred_check
      _
    $region23: #{tpu_custom_call.1} parent=1 // pred_check_branch
      %57 = sbr.rel (0) target = $region25
    $region24: #{tpu_custom_call.1} parent=1 // pred_region
      %59 = dma.done [#allocation3], 128
    $region25: #{tpu_custom_call.1} parent=1 // pred_fallthru
      _
    // Predicated region
    $region26: #{tpu_custom_call.1} parent=1 // pred_check
      _
    $region27: #{tpu_custom_call.1} parent=1 // pred_check_branch
      %61 = sbr.rel (0) target = $region29
    $region28: #{tpu_custom_call.1} parent=1 // pred_region
      %63 = dma.done [#allocation6], 1024
    $region29: #{tpu_custom_call.1} parent=1 // pred_fallthru
      _
    // Predicated region
    $region30: #{tpu_custom_call.1} parent=1 // pred_check
      _
    $region31: #{tpu_custom_call.1} parent=1 // pred_check_branch
      %65 = sbr.rel (0) target = $region33
    $region32: #{tpu_custom_call.1} parent=1 // pred_region
      %67 = dma.done [#allocation6], 1024
    $region33: #{tpu_custom_call.1} parent=1 // pred_fallthru
      _
    %v68 = vld [vmem:[#allocation2] sm:$0xf]
    %v69 = vld [vmem:[#allocation2 + $0x4] sm:$0xf]
    %v70 = vld [vmem:[#allocation5] sm:$0xf]
    %v71 = vld [vmem:[#allocation5 + $0x4] sm:$0xf]
    %v72 = vld [vmem:[#allocation5 + $0x8] sm:$0xf]
    %v73 = vld [vmem:[#allocation5 + $0xc] sm:$0xf]
    %v74 = vld [vmem:[#allocation5 + $0x10] sm:$0xf]
    %v75 = vld [vmem:[#allocation5 + $0x14] sm:$0xf]
    %v76 = vld [vmem:[#allocation5 + $0x18] sm:$0xf]
    %v77 = vld [vmem:[#allocation5 + $0x1c] sm:$0xf]
    %v78 = vld [vmem:[#allocation5 + $0x20] sm:$0xf]
    %v79 = vld [vmem:[#allocation5 + $0x24] sm:$0xf]
    %v80 = vld [vmem:[#allocation5 + $0x28] sm:$0xf]
    %v81 = vld [vmem:[#allocation5 + $0x2c] sm:$0xf]
    %v82 = vld [vmem:[#allocation5 + $0x30] sm:$0xf]
    %v83 = vld [vmem:[#allocation5 + $0x34] sm:$0xf]
    %v84 = vld [vmem:[#allocation5 + $0x38] sm:$0xf]
    %v85 = vld [vmem:[#allocation5 + $0x3c] sm:$0xf]
    %v86 = vld [vmem:[%s2] sm:$0x1]
    %v88 = vperm.slane %v86, 0
    %v92 = vunpack.c.l.b16 %v68
    %v93 = vunpack.c.l.b16 %v69
    %v94 = vpack.c.b16 %v93, %v92
    %v112 = vunpack.c.l.b16 %v70
    %v113 = vunpack.c.l.b16 %v71
    %v114 = vunpack.c.l.b16 %v72
    %v115 = vunpack.c.l.b16 %v73
    %v116 = vunpack.c.l.b16 %v74
    %v117 = vunpack.c.l.b16 %v75
    %v118 = vunpack.c.l.b16 %v76
    %v119 = vunpack.c.l.b16 %v77
    %v120 = vunpack.c.l.b16 %v78
    %v121 = vunpack.c.l.b16 %v79
    %v122 = vunpack.c.l.b16 %v80
    %v123 = vunpack.c.l.b16 %v81
    %v124 = vunpack.c.l.b16 %v82
    %v125 = vunpack.c.l.b16 %v83
    %v126 = vunpack.c.l.b16 %v84
    %v127 = vunpack.c.l.b16 %v85
    %v128 = vpack.c.b16 %v113, %v112
    %v129 = vpack.c.b16 %v115, %v114
    %v130 = vpack.c.b16 %v117, %v116
    %v131 = vpack.c.b16 %v119, %v118
    %v132 = vpack.c.b16 %v121, %v120
    %v133 = vpack.c.b16 %v123, %v122
    %v134 = vpack.c.b16 %v125, %v124
    %v135 = vpack.c.b16 %v127, %v126
    %144 = vmatpush.bf16.xpose.msra.mxu0 %v135
    %145 = vmatpush.bf16.xpose.msra.mxu0 %v134
    %146 = vmatpush.bf16.xpose.msra.mxu0 %v133
    %147 = vmatpush.bf16.xpose.msra.mxu0 %v132
    %148 = vmatpush.bf16.xpose.msra.mxu0 %v131
    %149 = vmatpush.bf16.xpose.msra.mxu0 %v130
    %150 = vmatpush.bf16.xpose.msra.mxu0 %v129
    %151 = vmatpush.bf16.xpose.msra.mxu0 %v128
    %152 = vmatmul.bf16.gmra.mxu0 %v94
    %v153 = vpop.f32.mrf.mxu0
    %v154 = vadd.f32 %v88, %v153
    %v155 = vpop.f32.mrf.mxu0
    %v156 = vadd.f32 %v88, %v155
    %157 = vdwg.mxu0
    %v158 = vmax.f32 %v154, 0.0
    %v159 = vmax.f32 %v156, 0.0
    %v160 = vpack.c.bf16 %v159, %v158
    %v161 = vld [vmem:[#allocation7] sm:$0xf]
    %v162 = vld [vmem:[#allocation7 + $0x4] sm:$0xf]
    %v163 = vld [vmem:[#allocation7 + $0x8] sm:$0xf]
    %v164 = vld [vmem:[#allocation7 + $0xc] sm:$0xf]
    %v165 = vld [vmem:[#allocation7 + $0x10] sm:$0xf]
    %v166 = vld [vmem:[#allocation7 + $0x14] sm:$0xf]
    %v167 = vld [vmem:[#allocation7 + $0x18] sm:$0xf]
    %v168 = vld [vmem:[#allocation7 + $0x1c] sm:$0xf]
    %v169 = vld [vmem:[#allocation7 + $0x20] sm:$0xf]
    %v170 = vld [vmem:[#allocation7 + $0x24] sm:$0xf]
    %v171 = vld [vmem:[#allocation7 + $0x28] sm:$0xf]
    %v172 = vld [vmem:[#allocation7 + $0x2c] sm:$0xf]
    %v173 = vld [vmem:[#allocation7 + $0x30] sm:$0xf]
    %v174 = vld [vmem:[#allocation7 + $0x34] sm:$0xf]
    %v175 = vld [vmem:[#allocation7 + $0x38] sm:$0xf]
    %v176 = vld [vmem:[#allocation7 + $0x3c] sm:$0xf]
    %v193 = vunpack.c.l.b16 %v161
    %v194 = vunpack.c.l.b16 %v162
    %v195 = vunpack.c.l.b16 %v163
    %v196 = vunpack.c.l.b16 %v164
    %v197 = vunpack.c.l.b16 %v165
    %v198 = vunpack.c.l.b16 %v166
    %v199 = vunpack.c.l.b16 %v167
    %v200 = vunpack.c.l.b16 %v168
    %v201 = vunpack.c.l.b16 %v169
    %v202 = vunpack.c.l.b16 %v170
    %v203 = vunpack.c.l.b16 %v171
    %v204 = vunpack.c.l.b16 %v172
    %v205 = vunpack.c.l.b16 %v173
    %v206 = vunpack.c.l.b16 %v174
    %v207 = vunpack.c.l.b16 %v175
    %v208 = vunpack.c.l.b16 %v176
    %v209 = vpack.c.b16 %v194, %v193
    %v210 = vpack.c.b16 %v196, %v195
    %v211 = vpack.c.b16 %v198, %v197
    %v212 = vpack.c.b16 %v200, %v199
    %v213 = vpack.c.b16 %v202, %v201
    %v214 = vpack.c.b16 %v204, %v203
    %v215 = vpack.c.b16 %v206, %v205
    %v216 = vpack.c.b16 %v208, %v207
    %225 = vmatpush.bf16.msra.mxu0 %v216
    %226 = vmatpush.bf16.msra.mxu0 %v215
    %227 = vmatpush.bf16.msra.mxu0 %v214
    %228 = vmatpush.bf16.msra.mxu0 %v213
    %229 = vmatpush.bf16.msra.mxu0 %v212
    %230 = vmatpush.bf16.msra.mxu0 %v211
    %231 = vmatpush.bf16.msra.mxu0 %v210
    %232 = vmatpush.bf16.msra.mxu0 %v209
    %233 = vmatmul.bf16.gmra.mxu0 %v160
    %v234 = vpop.f32.mrf.mxu0
    %v235 = vadd.f32 0.0, %v234
    %v236 = vpop.f32.mrf.mxu0
    %v237 = vadd.f32 0.0, %v236
    %238 = vdwg.mxu0
    %p239 = scmp.eq.s32.totalorder 0, 0
    // Predicated region
    $region34: #{tpu_custom_call.1} parent=1 // pred_check
      %p240 = pneg %p239
    $region35: #{tpu_custom_call.1} parent=1 // pred_check_branch
      %242 = sbr.rel (%p240) target = $region37
    $region36: #{tpu_custom_call.1} parent=1 // pred_region
      %v243 = vld [vmem:[%s4] sm:$0x1]
      %v245 = vperm.slane %v243, 0
      %v247 = vadd.f32 %v245, %v235
      %v248 = vadd.f32 %v245, %v237
      %249 = vst [vmem:[#allocation8] sm:$0xff] %v247
      %250 = vst [vmem:[#allocation8 + $0x8] sm:$0xff] %v248
    $region37: #{tpu_custom_call.1} parent=1 // pred_fallthru
      _
    %p251 = scmp.gt.s32.totalorder 0, 0
    // Predicated region
    $region38: #{tpu_custom_call.1} parent=1 // pred_check
      %p252 = pneg %p251
    $region39: #{tpu_custom_call.1} parent=1 // pred_check_branch
      %254 = sbr.rel (%p252) target = $region41
    $region40: #{tpu_custom_call.1} parent=1 // pred_region
      %v255 = vld [vmem:[#allocation8] sm:$0xff]
      %v256 = vld [vmem:[#allocation8 + $0x8] sm:$0xff]
      %v257 = vadd.f32 %v255, %v235
      %v258 = vadd.f32 %v256, %v237
      %259 = vst [vmem:[#allocation8] sm:$0xff] %v257
      %260 = vst [vmem:[#allocation8 + $0x8] sm:$0xff] %v258
    $region41: #{tpu_custom_call.1} parent=1 // pred_fallthru
      _
    // Predicated region
    $region42: #{tpu_custom_call.1} parent=1 // pred_check
      _
    $region43: #{tpu_custom_call.1} parent=1 // pred_check_branch
      %262 = sbr.rel (0) target = $region45
    $region44: #{tpu_custom_call.1} parent=1 // pred_region
      %264 = vsyncadd [#allocation4], 0
      %s265 = sshll.u32 [#allocation8], 4
      %s266 = int_to_ptr.vmem [resolvable:$true] %s265
      %s267 = sshll.u32 %s5, 4
      %s268 = int_to_ptr.hbm [resolvable:$true] %s267
      %273 = dma.vmem_to_hbm [thread:$0]  %s266, 256, %s268, [#allocation4], 128, 128, 8
    $region45: #{tpu_custom_call.1} parent=1 // pred_fallthru
      _
    // Predicated region
    $region46: #{tpu_custom_call.1} parent=1 // pred_check
      _
    $region47: #{tpu_custom_call.1} parent=1 // pred_check_branch
      %275 = sbr.rel (0) target = $region49
    $region48: #{tpu_custom_call.1} parent=1 // pred_region
      %277 = dma.done [#allocation4], 256
    $region49: #{tpu_custom_call.1} parent=1 // pred_fallthru
      _
    %278 = vsyncpa [#allocation3], 1
    %279 = vsyncpa [#allocation6], 1
    %280 = vsyncpa [#allocation4], 1

</llo_original>
